<compile_context>
chip_gen: v5e
topology: v5e:2x2
jax: 0.10.0
libtpu: 0.0.40
codegen_flags: <defaults>
</compile_context>

<pallas_src>
import functools

import jax
import jax.numpy as jnp
from jax.experimental import pallas as pl
from jax.experimental.pallas import tpu as pltpu


# ---------------------------------------------------------------------------
# Pass 1: accumulate raw input moments  sum(x)  and  sum(x x^T)
# ---------------------------------------------------------------------------
def moments_kernel(x_ref, mom_ref):
    # x_ref:   (Cin, tile_n)         (batch dim squeezed by BlockSpec)
    # mom_ref: (Cin, Cin + 1)        col 0 = sum_x, cols 1.. = sum(x x^T)
    is_first = jnp.logical_and(pl.program_id(0) == 0, pl.program_id(1) == 0)

    @pl.when(is_first)
    def _():
        mom_ref[...] = jnp.zeros_like(mom_ref)

    x = x_ref[...]                                              # (Cin, tn)
    cin = x.shape[0]
    # Sum over positions (lane reduce, XLU).
    mom_ref[:, 0:1] += jnp.sum(x, axis=1, keepdims=True)        # (Cin, 1)
    # x x^T rows: one VPU multiply + lane reduce per channel (Cin is tiny,
    # and pass 1 is HBM-bound anyway — compute is pure filler).
    for c in range(cin):
        mom_ref[:, c + 1:c + 2] += jnp.sum(
            x * x[c:c + 1, :], axis=1, keepdims=True)           # (Cin, 1)


# ---------------------------------------------------------------------------
# Pass 2: conv1 (VPU) -> fused BN + ReLU -> conv2 (MXU), lane-dense output
# ---------------------------------------------------------------------------
def apply_kernel(x_ref, w1_ref, w2_ref, p_ref, o_ref):
    # x_ref: (Cin, tile_n)   w1_ref: (F, Cin)   w2_ref: (F, F)
    # p_ref: (F, 3) = [scale, shift, b2]        o_ref: (F, tile_n)
    x = x_ref[...]                                              # (Cin, tn)
    w1 = w1_ref[...]                                            # (F, Cin)
    cin = x.shape[0]

    # Conv1d #1: contraction dim Cin (=4) is far below MXU width -> unroll as
    # Cin broadcast-FMAs on the VPU instead of a padded MXU matmul (keeps the
    # MXU slot free for conv2 below).
    h = w1[:, 0:1] * x[0:1, :]                                  # (F, tn)
    for c in range(1, cin):
        h = h + w1[:, c:c + 1] * x[c:c + 1, :]

    # BatchNorm (training-mode batch stats folded into scale/shift) + ReLU.
    r = jnp.maximum(h * p_ref[:, 0:1] + p_ref[:, 1:2], 0.0)     # (F, tn)

    # Conv1d #2 on the MXU: (F, F) @ (F, tn), then bias.
    out = jnp.dot(w2_ref[...], r,
                  preferred_element_type=jnp.float32) + p_ref[:, 2:3]

    o_ref[...] = out.astype(o_ref.dtype)


# ---------------------------------------------------------------------------
# Parameters / wrapper / reference
# ---------------------------------------------------------------------------
def init_params(key, input_channel, num_pos_feats):
    """Deterministic synthetic parameters (same shapes as the PyTorch module)."""
    k1, k2, k3, k4, k5, k6 = jax.random.split(key, 6)
    w1 = jax.random.normal(k1, (num_pos_feats, input_channel), jnp.float32) * 0.1
    b1 = jax.random.normal(k2, (num_pos_feats,), jnp.float32) * 0.1
    gamma = 1.0 + 0.1 * jax.random.normal(k3, (num_pos_feats,), jnp.float32)
    beta = 0.1 * jax.random.normal(k4, (num_pos_feats,), jnp.float32)
    w2 = jax.random.normal(k5, (num_pos_feats, num_pos_feats), jnp.float32) * 0.1
    b2 = jax.random.normal(k6, (num_pos_feats,), jnp.float32) * 0.1
    return dict(w1=w1, b1=b1, gamma=gamma, beta=beta, w2=w2, b2=b2)


def position_embedding_learned(xyz, params, *, tile_n=1024, eps=1e-5):
    """xyz: (B, N, C_in)  ->  (B, num_pos_feats, N), matching the PyTorch module."""
    B, N, Cin = xyz.shape
    F = params["w1"].shape[0]

    # Channels-first layout so the kernels are lane-dense over positions.
    # (x is the small tensor; this transpose is cheap, unlike an output one.)
    x_t = jnp.transpose(xyz.astype(jnp.float32), (0, 2, 1))        # (B, Cin, N)

    # Position-tile size: full N for small inputs, else 128-multiple tiles
    # (pad N; zero columns contribute nothing to the moment sums).
    if N <= tile_n:
        tn, n_pad = N, N
    else:
        tn = tile_n                                                # multiple of 128
        n_pad = ((N + tn - 1) // tn) * tn
    if n_pad != N:
        x_t = jnp.pad(x_t, ((0, 0), (0, 0), (0, n_pad - N)))
    n_tiles = n_pad // tn
    grid = (B, n_tiles)

    # ---- Pass 1: raw input moments (tiny resident accumulator) -------------
    # Output block is resident across the whole grid -> both axes "arbitrary".
    mom = pl.pallas_call(
        moments_kernel,
        out_shape=jax.ShapeDtypeStruct((Cin, Cin + 1), jnp.float32),
        grid=grid,
        in_specs=[pl.BlockSpec((None, Cin, tn), lambda b, t: (b, 0, t))],
        out_specs=pl.BlockSpec((Cin, Cin + 1), lambda b, t: (0, 0)),
        compiler_params=pltpu.CompilerParams(
            dimension_semantics=("arbitrary", "arbitrary"),
            vmem_limit_bytes=32 * 1024 * 1024),
    )(x_t)

    # ---- Tiny wrapper math: derive BN(train) scale/shift analytically ------
    # h = x @ W1^T (+ b1); b1 cancels exactly under the BN mean subtraction,
    # so it is dropped from the fused path entirely.  Zero-padded columns add
    # nothing to the sums, so dividing by the true P = B*N is exact.
    P = B * N
    w1 = params["w1"].astype(jnp.float32)                          # (F, Cin)
    mean_x = mom[:, 0] / P                                         # (Cin,)
    e_xxt = mom[:, 1:] / P                                         # (Cin, Cin)
    cov_x = e_xxt - jnp.outer(mean_x, mean_x)                      # (Cin, Cin)
    mean_h = w1 @ mean_x                                           # (F,)
    var_h = jnp.einsum("fc,cd,fd->f", w1, cov_x, w1)               # (F,)
    var_h = jnp.maximum(var_h, 0.0)                                # (biased var)
    scale = params["gamma"].astype(jnp.float32) * jax.lax.rsqrt(var_h + eps)
    shift = params["beta"].astype(jnp.float32) - mean_h * scale
    pvec = jnp.stack(
        [scale, shift, params["b2"].astype(jnp.float32)], axis=1)  # (F, 3)

    # ---- Pass 2: apply conv1 + BN + ReLU + conv2, emit (B, F, N) directly --
    out = pl.pallas_call(
        apply_kernel,
        out_shape=jax.ShapeDtypeStruct((B, F, n_pad), jnp.float32),
        grid=grid,
        in_specs=[
            pl.BlockSpec((None, Cin, tn), lambda b, t: (b, 0, t)),
            pl.BlockSpec((F, Cin), lambda b, t: (0, 0)),   # W1 resident
            pl.BlockSpec((F, F), lambda b, t: (0, 0)),     # W2 resident
            pl.BlockSpec((F, 3), lambda b, t: (0, 0)),     # packed scale/shift/b2
        ],
        out_specs=pl.BlockSpec((None, F, tn), lambda b, t: (b, 0, t)),
        compiler_params=pltpu.CompilerParams(
            dimension_semantics=("parallel", "parallel"),
            vmem_limit_bytes=32 * 1024 * 1024),
    )(x_t, w1, params["w2"].astype(jnp.float32), pvec)

    if n_pad != N:
        out = out[:, :, :N]
    return out                                                     # (B, F, N)


def reference_jax(xyz, params):
    """Pure-JAX reference mirroring the PyTorch forward (training-mode BN, incl. b1)."""
    h = jnp.einsum("bnc,fc->bnf", xyz, params["w1"]) + params["b1"]
    hf = h.reshape(-1, h.shape[-1])
    mean = jnp.mean(hf, axis=0)
    var = jnp.mean(jnp.square(hf - mean), axis=0)
    hn = (h - mean) * jax.lax.rsqrt(var + 1e-5) * params["gamma"] + params["beta"]
    r = jnp.maximum(hn, 0.0)
    out = jnp.einsum("bnf,gf->bng", r, params["w2"]) + params["b2"]
    return jnp.transpose(out, (0, 2, 1))


if __name__ == "__main__":
    B, N = 2, 16
    input_channel = 4
    num_pos_feats = 32

    key = jax.random.PRNGKey(0)
    k_x, k_p = jax.random.split(key)
    xyz = jax.random.normal(k_x, (B, N, input_channel), jnp.float32)
    params = init_params(k_p, input_channel, num_pos_feats)

    fwd = jax.jit(functools.partial(position_embedding_learned, tile_n=1024))
    out = fwd(xyz, params)
    out = jax.block_until_ready(out)

    ref = reference_jax(xyz, params)
    assert out.shape == (B, num_pos_feats, N), out.shape
    assert jnp.allclose(out, ref, atol=1e-4, rtol=1e-4), \
        float(jnp.max(jnp.abs(out - ref)))

    print("KERNEL_OK")
</pallas_src>

<mosaic_0001>
module attributes {stable_mosaic.version = 11 : i64} {
  func.func @moments_kernel(%arg0: i32, %arg1: i32, %arg2: memref<1x4x16xf32, #tpu.memory_space<vmem>>, %arg3: memref<4x5xf32, #tpu.memory_space<vmem>>) attributes {dimension_semantics = [#tpu.dimension_semantics<arbitrary>, #tpu.dimension_semantics<arbitrary>], iteration_bounds = array<i64: 2, 1>, scalar_prefetch = 0 : i64, scratch_operands = 0 : i64, tpu.core_type = #tpu.core_type<tc>, window_params = [{transform_indices = @transform_0, window_bounds = array<i64: 1, 4, 16>}, {pipeline_mode = #tpu.pipeline_mode<synchronous>, transform_indices = @transform_1, window_bounds = array<i64: 4, 5>}]} {
    %c0_i32 = arith.constant 0 : i32
    %0 = arith.cmpi eq, %arg0, %c0_i32 : i32
    %c0_i32_0 = arith.constant 0 : i32
    %1 = arith.cmpi eq, %arg1, %c0_i32_0 : i32
    %2 = arith.andi %0, %1 : i1
    %3 = arith.extui %2 : i1 to i32
    %c0_i32_1 = arith.constant 0 : i32
    %4 = arith.cmpi ne, %3, %c0_i32_1 : i32
    scf.if %4 {
      %cst_24 = arith.constant 0.000000e+00 : f32
      %44 = vector.broadcast %cst_24 : f32 to vector<4x5xf32>
      %c0_25 = arith.constant 0 : index
      %c0_26 = arith.constant 0 : index
      %45 = vector.load %arg3[%c0_25, %c0_26] : memref<4x5xf32, #tpu.memory_space<vmem>>, vector<4x5xf32>
      tpu.vector_store %arg3[%c0_25, %c0_26], %44 {strides = array<i32>} : memref<4x5xf32, #tpu.memory_space<vmem>>, vector<4x5xf32>,
    } else {
    }
    %c0 = arith.constant 0 : index
    %c0_2 = arith.constant 0 : index
    %c0_3 = arith.constant 0 : index
    %5 = vector.load %arg2[%c0, %c0_2, %c0_3] : memref<1x4x16xf32, #tpu.memory_space<vmem>>, vector<1x4x16xf32>
    %6 = vector.shape_cast %5 : vector<1x4x16xf32> to vector<4x16xf32>
    %c0_4 = arith.constant 0 : index
    %c0_5 = arith.constant 0 : index
    %7 = vector.load %arg3[%c0_4, %c0_5] : memref<4x5xf32, #tpu.memory_space<vmem>>, vector<4x1xf32>
    %cst = arith.constant dense<0.000000e+00> : vector<4xf32>
    %8 = vector.multi_reduction <add>, %6, %cst [1] : vector<4x16xf32> to vector<4xf32>
    %9 = vector.shape_cast %8 : vector<4xf32> to vector<4x1xf32>
    %10 = arith.addf %7, %9 : vector<4x1xf32>
    %c0_6 = arith.constant 0 : index
    %c0_7 = arith.constant 0 : index
    %11 = vector.load %arg3[%c0_6, %c0_7] : memref<4x5xf32, #tpu.memory_space<vmem>>, vector<4x1xf32>
    tpu.vector_store %arg3[%c0_6, %c0_7], %10 {strides = array<i32>} : memref<4x5xf32, #tpu.memory_space<vmem>>, vector<4x1xf32>,
    %c0_8 = arith.constant 0 : index
    %c1 = arith.constant 1 : index
    %12 = vector.load %arg3[%c0_8, %c1] : memref<4x5xf32, #tpu.memory_space<vmem>>, vector<4x1xf32>
    %13 = vector.extract_strided_slice %6 {offsets = [0, 0], sizes = [1, 16], strides = [1, 1]} : vector<4x16xf32> to vector<1x16xf32>
    %14 = vector.broadcast %13 : vector<1x16xf32> to vector<4x16xf32>
    %15 = arith.mulf %6, %14 : vector<4x16xf32>
    %cst_9 = arith.constant dense<0.000000e+00> : vector<4xf32>
    %16 = vector.multi_reduction <add>, %15, %cst_9 [1] : vector<4x16xf32> to vector<4xf32>
    %17 = vector.shape_cast %16 : vector<4xf32> to vector<4x1xf32>
    %18 = arith.addf %12, %17 : vector<4x1xf32>
    %c0_10 = arith.constant 0 : index
    %c1_11 = arith.constant 1 : index
    %19 = vector.load %arg3[%c0_10, %c1_11] : memref<4x5xf32, #tpu.memory_space<vmem>>, vector<4x1xf32>
    tpu.vector_store %arg3[%c0_10, %c1_11], %18 {strides = array<i32>} : memref<4x5xf32, #tpu.memory_space<vmem>>, vector<4x1xf32>,
    %c0_12 = arith.constant 0 : index
    %c2 = arith.constant 2 : index
    %20 = vector.load %arg3[%c0_12, %c2] : memref<4x5xf32, #tpu.memory_space<vmem>>, vector<4x1xf32>
    %21 = vector.extract_strided_slice %6 {offsets = [1, 0], sizes = [1, 16], strides = [1, 1]} : vector<4x16xf32> to vector<1x16xf32>
    %22 = vector.broadcast %21 : vector<1x16xf32> to vector<4x16xf32>
    %23 = arith.mulf %6, %22 : vector<4x16xf32>
    %cst_13 = arith.constant dense<0.000000e+00> : vector<4xf32>
    %24 = vector.multi_reduction <add>, %23, %cst_13 [1] : vector<4x16xf32> to vector<4xf32>
    %25 = vector.shape_cast %24 : vector<4xf32> to vector<4x1xf32>
    %26 = arith.addf %20, %25 : vector<4x1xf32>
    %c0_14 = arith.constant 0 : index
    %c2_15 = arith.constant 2 : index
    %27 = vector.load %arg3[%c0_14, %c2_15] : memref<4x5xf32, #tpu.memory_space<vmem>>, vector<4x1xf32>
    tpu.vector_store %arg3[%c0_14, %c2_15], %26 {strides = array<i32>} : memref<4x5xf32, #tpu.memory_space<vmem>>, vector<4x1xf32>,
    %c0_16 = arith.constant 0 : index
    %c3 = arith.constant 3 : index
    %28 = vector.load %arg3[%c0_16, %c3] : memref<4x5xf32, #tpu.memory_space<vmem>>, vector<4x1xf32>
    %29 = vector.extract_strided_slice %6 {offsets = [2, 0], sizes = [1, 16], strides = [1, 1]} : vector<4x16xf32> to vector<1x16xf32>
    %30 = vector.broadcast %29 : vector<1x16xf32> to vector<4x16xf32>
    %31 = arith.mulf %6, %30 : vector<4x16xf32>
    %cst_17 = arith.constant dense<0.000000e+00> : vector<4xf32>
    %32 = vector.multi_reduction <add>, %31, %cst_17 [1] : vector<4x16xf32> to vector<4xf32>
    %33 = vector.shape_cast %32 : vector<4xf32> to vector<4x1xf32>
    %34 = arith.addf %28, %33 : vector<4x1xf32>
    %c0_18 = arith.constant 0 : index
    %c3_19 = arith.constant 3 : index
    %35 = vector.load %arg3[%c0_18, %c3_19] : memref<4x5xf32, #tpu.memory_space<vmem>>, vector<4x1xf32>
    tpu.vector_store %arg3[%c0_18, %c3_19], %34 {strides = array<i32>} : memref<4x5xf32, #tpu.memory_space<vmem>>, vector<4x1xf32>,
    %c0_20 = arith.constant 0 : index
    %c4 = arith.constant 4 : index
    %36 = vector.load %arg3[%c0_20, %c4] : memref<4x5xf32, #tpu.memory_space<vmem>>, vector<4x1xf32>
    %37 = vector.extract_strided_slice %6 {offsets = [3, 0], sizes = [1, 16], strides = [1, 1]} : vector<4x16xf32> to vector<1x16xf32>
    %38 = vector.broadcast %37 : vector<1x16xf32> to vector<4x16xf32>
    %39 = arith.mulf %6, %38 : vector<4x16xf32>
    %cst_21 = arith.constant dense<0.000000e+00> : vector<4xf32>
    %40 = vector.multi_reduction <add>, %39, %cst_21 [1] : vector<4x16xf32> to vector<4xf32>
    %41 = vector.shape_cast %40 : vector<4xf32> to vector<4x1xf32>
    %42 = arith.addf %36, %41 : vector<4x1xf32>
    %c0_22 = arith.constant 0 : index
    %c4_23 = arith.constant 4 : index
    %43 = vector.load %arg3[%c0_22, %c4_23] : memref<4x5xf32, #tpu.memory_space<vmem>>, vector<4x1xf32>
    tpu.vector_store %arg3[%c0_22, %c4_23], %42 {strides = array<i32>} : memref<4x5xf32, #tpu.memory_space<vmem>>, vector<4x1xf32>,
    return
  }
  func.func @transform_0(%arg0: i32, %arg1: i32) -> (i32, i32, i32) {
    %c0_i32 = arith.constant 0 : i32
    %c0_i32_0 = arith.constant 0 : i32
    return %arg0, %c0_i32, %arg1 : i32, i32, i32
  }
  func.func @transform_1(%arg0: i32, %arg1: i32) -> (i32, i32) {
    %c0_i32 = arith.constant 0 : i32
    %c0_i32_0 = arith.constant 0 : i32
    %c0_i32_1 = arith.constant 0 : i32
    return %c0_i32, %c0_i32_0 : i32, i32
  }
}

module attributes {stable_mosaic.version = 11 : i64} {
  func.func @apply_kernel(%arg0: i32, %arg1: i32, %arg2: memref<1x4x16xf32, #tpu.memory_space<vmem>>, %arg3: memref<32x4xf32, #tpu.memory_space<vmem>>, %arg4: memref<32x32xf32, #tpu.memory_space<vmem>>, %arg5: memref<32x3xf32, #tpu.memory_space<vmem>>, %arg6: memref<1x32x16xf32, #tpu.memory_space<vmem>>) attributes {dimension_semantics = [#tpu.dimension_semantics<parallel>, #tpu.dimension_semantics<parallel>], iteration_bounds = array<i64: 2, 1>, scalar_prefetch = 0 : i64, scratch_operands = 0 : i64, tpu.core_type = #tpu.core_type<tc>, window_params = [{transform_indices = @transform_0, window_bounds = array<i64: 1, 4, 16>}, {pipeline_mode = #tpu.pipeline_mode<synchronous>, transform_indices = @transform_1, window_bounds = array<i64: 32, 4>}, {pipeline_mode = #tpu.pipeline_mode<synchronous>, transform_indices = @transform_2, window_bounds = array<i64: 32, 32>}, {pipeline_mode = #tpu.pipeline_mode<synchronous>, transform_indices = @transform_3, window_bounds = array<i64: 32, 3>}, {transform_indices = @transform_4, window_bounds = array<i64: 1, 32, 16>}]} {
    %c0 = arith.constant 0 : index
    %c0_0 = arith.constant 0 : index
    %c0_1 = arith.constant 0 : index
    %0 = vector.load %arg2[%c0, %c0_0, %c0_1] : memref<1x4x16xf32, #tpu.memory_space<vmem>>, vector<1x4x16xf32>
    %1 = vector.shape_cast %0 : vector<1x4x16xf32> to vector<4x16xf32>
    %c0_2 = arith.constant 0 : index
    %c0_3 = arith.constant 0 : index
    %2 = vector.load %arg3[%c0_2, %c0_3] : memref<32x4xf32, #tpu.memory_space<vmem>>, vector<32x4xf32>
    %3 = vector.extract_strided_slice %2 {offsets = [0, 0], sizes = [32, 1], strides = [1, 1]} : vector<32x4xf32> to vector<32x1xf32>
    %4 = vector.extract_strided_slice %1 {offsets = [0, 0], sizes = [1, 16], strides = [1, 1]} : vector<4x16xf32> to vector<1x16xf32>
    %5 = vector.broadcast %3 : vector<32x1xf32> to vector<32x16xf32>
    %6 = vector.broadcast %4 : vector<1x16xf32> to vector<32x16xf32>
    %7 = arith.mulf %5, %6 : vector<32x16xf32>
    %8 = vector.extract_strided_slice %2 {offsets = [0, 1], sizes = [32, 1], strides = [1, 1]} : vector<32x4xf32> to vector<32x1xf32>
    %9 = vector.extract_strided_slice %1 {offsets = [1, 0], sizes = [1, 16], strides = [1, 1]} : vector<4x16xf32> to vector<1x16xf32>
    %10 = vector.broadcast %8 : vector<32x1xf32> to vector<32x16xf32>
    %11 = vector.broadcast %9 : vector<1x16xf32> to vector<32x16xf32>
    %12 = arith.mulf %10, %11 : vector<32x16xf32>
    %13 = arith.addf %7, %12 : vector<32x16xf32>
    %14 = vector.extract_strided_slice %2 {offsets = [0, 2], sizes = [32, 1], strides = [1, 1]} : vector<32x4xf32> to vector<32x1xf32>
    %15 = vector.extract_strided_slice %1 {offsets = [2, 0], sizes = [1, 16], strides = [1, 1]} : vector<4x16xf32> to vector<1x16xf32>
    %16 = vector.broadcast %14 : vector<32x1xf32> to vector<32x16xf32>
    %17 = vector.broadcast %15 : vector<1x16xf32> to vector<32x16xf32>
    %18 = arith.mulf %16, %17 : vector<32x16xf32>
    %19 = arith.addf %13, %18 : vector<32x16xf32>
    %20 = vector.extract_strided_slice %2 {offsets = [0, 3], sizes = [32, 1], strides = [1, 1]} : vector<32x4xf32> to vector<32x1xf32>
    %21 = vector.extract_strided_slice %1 {offsets = [3, 0], sizes = [1, 16], strides = [1, 1]} : vector<4x16xf32> to vector<1x16xf32>
    %22 = vector.broadcast %20 : vector<32x1xf32> to vector<32x16xf32>
    %23 = vector.broadcast %21 : vector<1x16xf32> to vector<32x16xf32>
    %24 = arith.mulf %22, %23 : vector<32x16xf32>
    %25 = arith.addf %19, %24 : vector<32x16xf32>
    %c0_4 = arith.constant 0 : index
    %c0_5 = arith.constant 0 : index
    %26 = vector.load %arg5[%c0_4, %c0_5] : memref<32x3xf32, #tpu.memory_space<vmem>>, vector<32x1xf32>
    %27 = vector.broadcast %26 : vector<32x1xf32> to vector<32x16xf32>
    %28 = arith.mulf %25, %27 : vector<32x16xf32>
    %c0_6 = arith.constant 0 : index
    %c1 = arith.constant 1 : index
    %29 = vector.load %arg5[%c0_6, %c1] : memref<32x3xf32, #tpu.memory_space<vmem>>, vector<32x1xf32>
    %30 = vector.broadcast %29 : vector<32x1xf32> to vector<32x16xf32>
    %31 = arith.addf %28, %30 : vector<32x16xf32>
    %cst = arith.constant 0.000000e+00 : f32
    %32 = vector.broadcast %cst : f32 to vector<32x16xf32>
    %33 = arith.maximumf %31, %32 : vector<32x16xf32>
    %c0_7 = arith.constant 0 : index
    %c0_8 = arith.constant 0 : index
    %34 = vector.load %arg4[%c0_7, %c0_8] : memref<32x32xf32, #tpu.memory_space<vmem>>, vector<32x32xf32>
    %cst_9 = arith.constant dense<0.000000e+00> : vector<32x16xf32>
    %35 = tpu.matmul %34, %33, %cst_9 {dimension_numbers = #tpu.dot_dimension_numbers<[1], [0], [0], [1], [0, 0, 1, 1], [], []>} : vector<32x32xf32>, vector<32x16xf32>, vector<32x16xf32> -> vector<32x16xf32>
    %c0_10 = arith.constant 0 : index
    %c2 = arith.constant 2 : index
    %36 = vector.load %arg5[%c0_10, %c2] : memref<32x3xf32, #tpu.memory_space<vmem>>, vector<32x1xf32>
    %37 = vector.broadcast %36 : vector<32x1xf32> to vector<32x16xf32>
    %38 = arith.addf %35, %37 : vector<32x16xf32>
    %c0_11 = arith.constant 0 : index
    %c0_12 = arith.constant 0 : index
    %c0_13 = arith.constant 0 : index
    %39 = vector.load %arg6[%c0_11, %c0_12, %c0_13] : memref<1x32x16xf32, #tpu.memory_space<vmem>>, vector<1x32x16xf32>
    %40 = vector.shape_cast %39 : vector<1x32x16xf32> to vector<32x16xf32>
    %41 = vector.shape_cast %38 : vector<32x16xf32> to vector<1x32x16xf32>
    tpu.vector_store %arg6[%c0_11, %c0_12, %c0_13], %41 {strides = array<i32>} : memref<1x32x16xf32, #tpu.memory_space<vmem>>, vector<1x32x16xf32>,
    return
  }
  func.func @transform_0(%arg0: i32, %arg1: i32) -> (i32, i32, i32) {
    %c0_i32 = arith.constant 0 : i32
    %c0_i32_0 = arith.constant 0 : i32
    return %arg0, %c0_i32, %arg1 : i32, i32, i32
  }
  func.func @transform_1(%arg0: i32, %arg1: i32) -> (i32, i32) {
    %c0_i32 = arith.constant 0 : i32
    %c0_i32_0 = arith.constant 0 : i32
    %c0_i32_1 = arith.constant 0 : i32
    return %c0_i32, %c0_i32_0 : i32, i32
  }
  func.func @transform_2(%arg0: i32, %arg1: i32) -> (i32, i32) {
    %c0_i32 = arith.constant 0 : i32
    %c0_i32_0 = arith.constant 0 : i32
    %c0_i32_1 = arith.constant 0 : i32
    return %c0_i32, %c0_i32_0 : i32, i32
  }
  func.func @transform_3(%arg0: i32, %arg1: i32) -> (i32, i32) {
    %c0_i32 = arith.constant 0 : i32
    %c0_i32_0 = arith.constant 0 : i32
    %c0_i32_1 = arith.constant 0 : i32
    return %c0_i32, %c0_i32_0 : i32, i32
  }
  func.func @transform_4(%arg0: i32, %arg1: i32) -> (i32, i32, i32) {
    %c0_i32 = arith.constant 0 : i32
    %c0_i32_0 = arith.constant 0 : i32
    return %arg0, %c0_i32, %arg1 : i32, i32, i32
  }
}

</mosaic_0001>

<llo_original>
// kernel: position_embedding_learned.2
$region0: #{position_embedding_learned.2}
  #allocation0 [shape = 'u32[]', space=smem, size = 0x4, offset = 0x4, fixed_abs, tag = 'smem constant byte address 0x4 - core index']
  #allocation1 [shape = 'u32[72,128]{1,0:T(1,128)}', space=vmem, size = 0x9000, scoped, tag = 'internal scratch']
  %s0 = inlined_call_operand.hbm [shape: f32[2,4,16], index: 0, kind: input, shape index: {}]
  %s1 = inlined_call_operand.vmem [shape: f32[4,5], index: 1, kind: output, shape index: {}]
  %s2 = sld [smem:[#allocation0]]
  $region45: #{position_embedding_learned.2} parent=0
    _
  %s4 = ssub.s32 1, %s2
  %s5 = scalar_select 0, %s4, %s2
  $region1: #{position_embedding_learned.2} parent=0
    #allocation2 [shape = 'u8[4096]{0}', space=vmem, size = 0x1000, scoped, tag = 'input window, operand 0']
    #allocation3 [shape = 's32[2]{0}', space=sflag, size = 0x8, scoped, tag = 'scoped memory for position_embedding_learned.2']
    %6 = vsyncpa [#allocation3], 0
    %s7 = scalar_lea.sflag [#allocation3], 1
    %8 = vsyncpa %s7, 0
    loop: start=0, step=1, limit=4
    $region2: #{position_embedding_learned.2} parent=1 // loop_pre_header
      _
    $region3: #{position_embedding_learned.2} parent=1 // loop_header
      %s10 = sphi 0, %s14
      %p11 = scmp.ge.s32.totalorder %s10, 4
      %s17 = sphi 0, %s29
      %s18 = sphi 0, %s25
      %s19 = sphi 0, %s17
      %s20 = sphi 0, %s18
      %s21 = sphi 0, %s19
      %s22 = sphi 0, %s20
      %s34 = sphi 0, %s36
      %s37 = sphi 0, %s34
      %s38 = sphi 0, %s37
      %s54 = sphi 0, %s38
      %s58 = sphi 0, %s58
      %s60 = sphi 0, %s58
      %s61 = sphi 0, %s60
      %s75 = sphi 0, %s61
    $region4: #{position_embedding_learned.2} parent=1 // loop_header_branch
      %13 = sbr.rel (%p11) target = $region8
    $region5: #{position_embedding_learned.2} parent=1 // loop_body
      %s15 = ssub.s32 %s10, 1
      %s16 = ssub.s32 %s10, 2
      %s23 = sadd.s32 1, %s18
      %p24 = scmp.ge.s32.totalorder %s23, 1
      %s25 = scalar_select %p24, 0, %s23
      %s26 = sadd.s32 1, %s17
      %s27 = scalar_select %p24, %s26, %s17
      %p28 = scmp.ge.s32.totalorder %s27, 2
      %s29 = scalar_select %p28, 0, %s27
      %s30 = ssub.s32 %s17, %s29
      %s31 = ssub.s32 %s18, %s25
      %s32 = sor.u32 %s30, %s31
      %p33 = scmp.eq.s32.totalorder %s32, 0
      %s35 = sadd.s32 %s34, 1
      %s36 = scalar_select %p33, %s34, %s35
      %p39 = pneg %p33
      %p40 = scmp.eq.s32.totalorder %s10, 1
      %p41 = por %p39, %p40
      %p42 = scmp.ne.s32.totalorder %s34, %s37
      %p43 = scmp.eq.s32.totalorder %s10, 0
      %p44 = por %p42, %p43
      %p45 = scmp.ne.s32.totalorder %s34, %s37
      %p46 = scmp.eq.s32.totalorder %s15, 1
      %p47 = por %p45, %p46
      %p48 = scmp.ne.s32.totalorder %s37, %s38
      %p49 = scmp.eq.s32.totalorder %s15, 0
      %p50 = por %p48, %p49
      %p51 = scmp.ne.s32.totalorder %s37, %s38
      %p52 = scmp.eq.s32.totalorder %s16, 1
      %p53 = por %p51, %p52
      %p55 = scmp.ne.s32.totalorder %s38, %s54
      %p56 = scmp.eq.s32.totalorder %s16, 0
      %p57 = por %p55, %p56
      %s59 = sadd.s32 %s58, 1
      %p62 = scmp.eq.s32.totalorder %s10, 1
      %p63 = scmp.ne.s32.totalorder %s58, %s60
      %p64 = scmp.eq.s32.totalorder %s10, 0
      %p65 = por %p63, %p64
      %p66 = scmp.ne.s32.totalorder %s58, %s60
      %p67 = scmp.eq.s32.totalorder %s15, 1
      %p68 = por %p66, %p67
      %p69 = scmp.ne.s32.totalorder %s60, %s61
      %p70 = scmp.eq.s32.totalorder %s15, 0
      %p71 = por %p69, %p70
      %p72 = scmp.ne.s32.totalorder %s60, %s61
      %p73 = scmp.eq.s32.totalorder %s16, 1
      %p74 = por %p72, %p73
      %p76 = scmp.ne.s32.totalorder %s61, %s75
      %p77 = scmp.eq.s32.totalorder %s16, 0
      %p78 = por %p76, %p77
      %p79 = scmp.le.s32.totalorder 1, %s10
      %p80 = scmp.lt.s32.totalorder %s10, 3
      %p81 = pnand %p79, %p80
      %p82 = pneg %p81
      // Predicated region
      $region9: #{position_embedding_learned.2} parent=5 // pred_check
        _
      $region10: #{position_embedding_learned.2} parent=5 // pred_check_branch
        %84 = sbr.rel (%p81) target = $region12
      $region11: #{position_embedding_learned.2} parent=5 // pred_region
        %s85 = ssub.s32 %s10, 1
      $region12: #{position_embedding_learned.2} parent=5 // pred_fallthru
        _
      %p86 = scmp.lt.s32.totalorder %s10, 2
      // Predicated region
      $region13: #{position_embedding_learned.2} parent=5 // pred_check
        %p87 = pneg %p86
      $region14: #{position_embedding_learned.2} parent=5 // pred_check_branch
        %89 = sbr.rel (%p87) target = $region16
      $region15: #{position_embedding_learned.2} parent=5 // pred_region
        // Predicated region
        $region17: #{position_embedding_learned.2} parent=15 // pred_check
          %p90 = pneg %p44
        $region18: #{position_embedding_learned.2} parent=15 // pred_check_branch
          %92 = sbr.rel (%p90) target = $region20
        $region19: #{position_embedding_learned.2} parent=15 // pred_region
          %s93 = sand.u32 %s34, 1
          %s94 = scalar_lea.sflag [#allocation3], %s93
          %s95 = sand.u32 %s34, 1
          %s96 = smul.addr %s95, 4
          %s97 = scalar_lea.vmem [#allocation2], %s96
          %99 = vsyncadd %s94, 0
          %s100 = sadd.s32 %s18, %s17
          %s101 = smul.addr %s100, 4
          %s102 = scalar_lea.hbm %s0, %s101
          %s104 = sshll.u32 %s102, 4
          %s105 = int_to_ptr.hbm [resolvable:$true] %s104
          %s106 = sshll.u32 %s97, 4
          %s107 = int_to_ptr.vmem [resolvable:$true] %s106
          %109 = dma.hbm_to_vmem [thread:$0]  %s105, 64, %s107, %s94
        $region20: #{position_embedding_learned.2} parent=15 // pred_fallthru
          _
      $region16: #{position_embedding_learned.2} parent=5 // pred_fallthru
        _
      %p110 = scmp.le.s32.totalorder 1, %s10
      %p111 = scmp.lt.s32.totalorder %s10, 3
      %p112 = pnand %p110, %p111
      %p113 = pneg %p112
      // Predicated region
      $region21: #{position_embedding_learned.2} parent=5 // pred_check
        _
      $region22: #{position_embedding_learned.2} parent=5 // pred_check_branch
        %115 = sbr.rel (%p112) target = $region24
      $region23: #{position_embedding_learned.2} parent=5 // pred_region
        %s116 = ssub.s32 %s10, 1
        %s117 = sand.u32 %s37, 1
        %s118 = scalar_lea.sflag [#allocation3], %s117
        %s119 = sand.u32 %s37, 1
        %s120 = smul.addr %s119, 4
        %s121 = scalar_lea.vmem [#allocation2], %s120
        // Predicated region
        $region25: #{position_embedding_learned.2} parent=23 // pred_check
          %p122 = pneg %p50
        $region26: #{position_embedding_learned.2} parent=23 // pred_check_branch
          %124 = sbr.rel (%p122) target = $region28
        $region27: #{position_embedding_learned.2} parent=23 // pred_region
          %126 = dma.done %s118, 64
        $region28: #{position_embedding_learned.2} parent=23 // pred_fallthru
          _
        %s127 = sand.u32 %s37, 1
        %s128 = scalar_lea.sflag [#allocation3], %s127
        %s129 = sand.u32 %s37, 1
        %s130 = smul.addr %s129, 4
        %s131 = scalar_lea.vmem [#allocation2], %s130
        %p132 = pneg %p50
        %p133 = pneg %p47
        %p134 = pneg %p71
        %p135 = pneg %p68
        %p136 = scmp.eq.s32.totalorder %s19, 0
        %p137 = scmp.eq.s32.totalorder %s20, 0
        %p138 = pnand %p136, %p137
        %p139 = pneg %p138
        // Predicated region
        $region29: #{position_embedding_learned.2} parent=23 // pred_check
          _
        $region30: #{position_embedding_learned.2} parent=23 // pred_check_branch
          %141 = sbr.rel (%p138) target = $region32
        $region31: #{position_embedding_learned.2} parent=23 // pred_region
          %vm142 = vcmask 35840
          %143 = vst.msk [vmem:[%s1] sm:$0xf] %vm142, 0.0
        $region32: #{position_embedding_learned.2} parent=23 // pred_fallthru
          _
        %v144 = vld [vmem:[%s121] sm:$0xf]
        %v145 = vld [vmem:[%s1] sm:$0xf]
        %vm146 = vcmask 125952
        %v147 = vsel %vm146, %v144, 0.0
        %148 = vadd.xlane.f32.xlu0 %v147
        %v149 = vpop.xlane.xlu0 %148
        %v150 = vadd.f32 %v145, %v149
        %vm151 = vcmask 3072
        %152 = vst.msk [vmem:[%s1] sm:$0xf] %vm151, %v150
        %v153 = vld [vmem:[%s1] sm:$0xf]
        %v154 = vperm.slane %v144, 0
        %v155 = vmul.f32 %v144, %v154
        %v156 = vsel %vm146, %v155, 0.0
        %157 = vadd.xlane.f32.xlu0 %v156
        %v158 = vpop.xlane.xlu0 %157
        %v159 = vadd.f32 %v153, %v158
        %vm160 = vcmask 11272
        %161 = vst.msk [vmem:[%s1] sm:$0xf] %vm160, %v159
        %v162 = vld [vmem:[%s1] sm:$0xf]
        %v163 = vperm.slane %v144, 1
        %v164 = vmul.f32 %v144, %v163
        %v165 = vsel %vm146, %v164, 0.0
        %166 = vadd.xlane.f32.xlu0 %v165
        %v167 = vpop.xlane.xlu0 %166
        %v168 = vadd.f32 %v162, %v167
        %vm169 = vcmask 19472
        %170 = vst.msk [vmem:[%s1] sm:$0xf] %vm169, %v168
        %v171 = vld [vmem:[%s1] sm:$0xf]
        %v172 = vperm.slane %v144, 2
        %v173 = vmul.f32 %v144, %v172
        %v174 = vsel %vm146, %v173, 0.0
        %175 = vadd.xlane.f32.xlu0 %v174
        %v176 = vpop.xlane.xlu0 %175
        %v177 = vadd.f32 %v171, %v176
        %vm178 = vcmask 27672
        %179 = vst.msk [vmem:[%s1] sm:$0xf] %vm178, %v177
        %v180 = vld [vmem:[%s1] sm:$0xf]
        %v181 = vperm.slane %v144, 3
        %v182 = vmul.f32 %v144, %v181
        %v183 = vsel %vm146, %v182, 0.0
        %184 = vadd.xlane.f32.xlu0 %v183
        %v185 = vpop.xlane.xlu0 %184
        %v186 = vadd.f32 %v180, %v185
        %vm187 = vcmask 35872
        %188 = vst.msk [vmem:[%s1] sm:$0xf] %vm187, %v186
        // Predicated region
        $region33: #{position_embedding_learned.2} parent=23 // pred_check
          %p189 = pneg %p68
        $region34: #{position_embedding_learned.2} parent=23 // pred_check_branch
          %191 = sbr.rel (%p189) target = $region36
        $region35: #{position_embedding_learned.2} parent=23 // pred_region
          _
        $region36: #{position_embedding_learned.2} parent=23 // pred_fallthru
          _
        // Predicated region
        $region37: #{position_embedding_learned.2} parent=23 // pred_check
          %p192 = pneg %p68
        $region38: #{position_embedding_learned.2} parent=23 // pred_check_branch
          %194 = sbr.rel (%p192) target = $region40
        $region39: #{position_embedding_learned.2} parent=23 // pred_region
          _
        $region40: #{position_embedding_learned.2} parent=23 // pred_fallthru
          _
      $region24: #{position_embedding_learned.2} parent=5 // pred_fallthru
        _
      %p195 = scmp.le.s32.totalorder 2, %s10
      // Predicated region
      $region41: #{position_embedding_learned.2} parent=5 // pred_check
        %p196 = pneg %p195
      $region42: #{position_embedding_learned.2} parent=5 // pred_check_branch
        %198 = sbr.rel (%p196) target = $region44
      $region43: #{position_embedding_learned.2} parent=5 // pred_region
        %s199 = ssub.s32 %s10, 2
      $region44: #{position_embedding_learned.2} parent=5 // pred_fallthru
        _
    $region6: #{position_embedding_learned.2} parent=1 // loop_footer
      %s14 = sadd.s32 1, %s10
    $region7: #{position_embedding_learned.2} parent=1 // loop_footer_branch
      %9 = sbr.rel target = $region3
    $region8: #{position_embedding_learned.2} parent=1 // loop_exit
      _
    %200 = vsyncpa [#allocation3], 1
    %s201 = scalar_lea.sflag [#allocation3], 1
    %202 = vsyncpa %s201, 1

// kernel: position_embedding_learned.3
$region0: #{position_embedding_learned.3}
  #allocation0 [shape = 'u32[]', space=smem, size = 0x4, offset = 0x4, fixed_abs, tag = 'smem constant byte address 0x4 - core index']
  #allocation1 [shape = 'u32[72,128]{1,0:T(1,128)}', space=vmem, size = 0x9000, scoped, tag = 'internal scratch']
  %s0 = inlined_call_operand.vmem [shape: f32[2,4,16], index: 0, kind: input, shape index: {}]
  %s1 = inlined_call_operand.vmem [shape: f32[32,4], index: 1, kind: input, shape index: {}]
  %s2 = inlined_call_operand.vmem [shape: f32[32,32], index: 2, kind: input, shape index: {}]
  %s3 = inlined_call_operand.vmem [shape: f32[32,3], index: 3, kind: input, shape index: {}]
  %s4 = inlined_call_operand.vmem [shape: f32[2,32,16], index: 4, kind: output, shape index: {}]
  %s5 = sld [smem:[#allocation0]]
  $region49: #{position_embedding_learned.3} parent=0
    _
  %s7 = ssub.s32 1, %s5
  %s8 = scalar_select 0, %s7, %s5
  loop: start=0, step=1, limit=4
  $region2: #{position_embedding_learned.3} parent=0 // loop_pre_header
    _
  $region3: #{position_embedding_learned.3} parent=0 // loop_header
    %s10 = sphi 0, %s14
    %p11 = scmp.ge.s32.totalorder %s10, 4
    %s17 = sphi 0, %s29
    %s18 = sphi 0, %s25
    %s19 = sphi 0, %s17
    %s20 = sphi 0, %s18
    %s21 = sphi 0, %s19
    %s22 = sphi 0, %s20
    %s34 = sphi 0, %s36
    %s37 = sphi 0, %s34
    %s38 = sphi 0, %s37
    %s54 = sphi 0, %s38
    %s58 = sphi 0, %s58
    %s60 = sphi 0, %s58
    %s61 = sphi 0, %s60
    %s75 = sphi 0, %s61
    %s79 = sphi 0, %s79
    %s81 = sphi 0, %s79
    %s82 = sphi 0, %s81
    %s96 = sphi 0, %s82
    %s100 = sphi 0, %s100
    %s102 = sphi 0, %s100
    %s103 = sphi 0, %s102
    %s117 = sphi 0, %s103
    %s125 = sphi 0, %s127
    %s128 = sphi 0, %s125
    %s129 = sphi 0, %s128
    %s145 = sphi 0, %s129
  $region4: #{position_embedding_learned.3} parent=0 // loop_header_branch
    %13 = sbr.rel (%p11) target = $region8
  $region5: #{position_embedding_learned.3} parent=0 // loop_body
    %s15 = ssub.s32 %s10, 1
    %s16 = ssub.s32 %s10, 2
    %s23 = sadd.s32 1, %s18
    %p24 = scmp.ge.s32.totalorder %s23, 1
    %s25 = scalar_select %p24, 0, %s23
    %s26 = sadd.s32 1, %s17
    %s27 = scalar_select %p24, %s26, %s17
    %p28 = scmp.ge.s32.totalorder %s27, 2
    %s29 = scalar_select %p28, 0, %s27
    %s30 = ssub.s32 %s17, %s29
    %s31 = ssub.s32 %s18, %s25
    %s32 = sor.u32 %s30, %s31
    %p33 = scmp.eq.s32.totalorder %s32, 0
    %s35 = sadd.s32 %s34, 1
    %s36 = scalar_select %p33, %s34, %s35
    %p39 = pneg %p33
    %p40 = scmp.eq.s32.totalorder %s10, 1
    %p41 = por %p39, %p40
    %p42 = scmp.ne.s32.totalorder %s34, %s37
    %p43 = scmp.eq.s32.totalorder %s10, 0
    %p44 = por %p42, %p43
    %p45 = scmp.ne.s32.totalorder %s34, %s37
    %p46 = scmp.eq.s32.totalorder %s15, 1
    %p47 = por %p45, %p46
    %p48 = scmp.ne.s32.totalorder %s37, %s38
    %p49 = scmp.eq.s32.totalorder %s15, 0
    %p50 = por %p48, %p49
    %p51 = scmp.ne.s32.totalorder %s37, %s38
    %p52 = scmp.eq.s32.totalorder %s16, 1
    %p53 = por %p51, %p52
    %p55 = scmp.ne.s32.totalorder %s38, %s54
    %p56 = scmp.eq.s32.totalorder %s16, 0
    %p57 = por %p55, %p56
    %s59 = sadd.s32 %s58, 1
    %p62 = scmp.eq.s32.totalorder %s10, 1
    %p63 = scmp.ne.s32.totalorder %s58, %s60
    %p64 = scmp.eq.s32.totalorder %s10, 0
    %p65 = por %p63, %p64
    %p66 = scmp.ne.s32.totalorder %s58, %s60
    %p67 = scmp.eq.s32.totalorder %s15, 1
    %p68 = por %p66, %p67
    %p69 = scmp.ne.s32.totalorder %s60, %s61
    %p70 = scmp.eq.s32.totalorder %s15, 0
    %p71 = por %p69, %p70
    %p72 = scmp.ne.s32.totalorder %s60, %s61
    %p73 = scmp.eq.s32.totalorder %s16, 1
    %p74 = por %p72, %p73
    %p76 = scmp.ne.s32.totalorder %s61, %s75
    %p77 = scmp.eq.s32.totalorder %s16, 0
    %p78 = por %p76, %p77
    %s80 = sadd.s32 %s79, 1
    %p83 = scmp.eq.s32.totalorder %s10, 1
    %p84 = scmp.ne.s32.totalorder %s79, %s81
    %p85 = scmp.eq.s32.totalorder %s10, 0
    %p86 = por %p84, %p85
    %p87 = scmp.ne.s32.totalorder %s79, %s81
    %p88 = scmp.eq.s32.totalorder %s15, 1
    %p89 = por %p87, %p88
    %p90 = scmp.ne.s32.totalorder %s81, %s82
    %p91 = scmp.eq.s32.totalorder %s15, 0
    %p92 = por %p90, %p91
    %p93 = scmp.ne.s32.totalorder %s81, %s82
    %p94 = scmp.eq.s32.totalorder %s16, 1
    %p95 = por %p93, %p94
    %p97 = scmp.ne.s32.totalorder %s82, %s96
    %p98 = scmp.eq.s32.totalorder %s16, 0
    %p99 = por %p97, %p98
    %s101 = sadd.s32 %s100, 1
    %p104 = scmp.eq.s32.totalorder %s10, 1
    %p105 = scmp.ne.s32.totalorder %s100, %s102
    %p106 = scmp.eq.s32.totalorder %s10, 0
    %p107 = por %p105, %p106
    %p108 = scmp.ne.s32.totalorder %s100, %s102
    %p109 = scmp.eq.s32.totalorder %s15, 1
    %p110 = por %p108, %p109
    %p111 = scmp.ne.s32.totalorder %s102, %s103
    %p112 = scmp.eq.s32.totalorder %s15, 0
    %p113 = por %p111, %p112
    %p114 = scmp.ne.s32.totalorder %s102, %s103
    %p115 = scmp.eq.s32.totalorder %s16, 1
    %p116 = por %p114, %p115
    %p118 = scmp.ne.s32.totalorder %s103, %s117
    %p119 = scmp.eq.s32.totalorder %s16, 0
    %p120 = por %p118, %p119
    %s121 = ssub.s32 %s17, %s29
    %s122 = ssub.s32 %s18, %s25
    %s123 = sor.u32 %s121, %s122
    %p124 = scmp.eq.s32.totalorder %s123, 0
    %s126 = sadd.s32 %s125, 1
    %s127 = scalar_select %p124, %s125, %s126
    %p130 = pneg %p124
    %p131 = scmp.eq.s32.totalorder %s10, 1
    %p132 = por %p130, %p131
    %p133 = scmp.ne.s32.totalorder %s125, %s128
    %p134 = scmp.eq.s32.totalorder %s10, 0
    %p135 = por %p133, %p134
    %p136 = scmp.ne.s32.totalorder %s125, %s128
    %p137 = scmp.eq.s32.totalorder %s15, 1
    %p138 = por %p136, %p137
    %p139 = scmp.ne.s32.totalorder %s128, %s129
    %p140 = scmp.eq.s32.totalorder %s15, 0
    %p141 = por %p139, %p140
    %p142 = scmp.ne.s32.totalorder %s128, %s129
    %p143 = scmp.eq.s32.totalorder %s16, 1
    %p144 = por %p142, %p143
    %p146 = scmp.ne.s32.totalorder %s129, %s145
    %p147 = scmp.eq.s32.totalorder %s16, 0
    %p148 = por %p146, %p147
    %p149 = scmp.le.s32.totalorder 1, %s10
    %p150 = scmp.lt.s32.totalorder %s10, 3
    %p151 = pnand %p149, %p150
    %p152 = pneg %p151
    // Predicated region
    $region9: #{position_embedding_learned.3} parent=5 // pred_check
      _
    $region10: #{position_embedding_learned.3} parent=5 // pred_check_branch
      %154 = sbr.rel (%p151) target = $region12
    $region11: #{position_embedding_learned.3} parent=5 // pred_region
      %s155 = ssub.s32 %s10, 1
      // Predicated region
      $region13: #{position_embedding_learned.3} parent=11 // pred_check
        %p156 = pneg %p71
      $region14: #{position_embedding_learned.3} parent=11 // pred_check_branch
        %158 = sbr.rel (%p156) target = $region16
      $region15: #{position_embedding_learned.3} parent=11 // pred_region
        _
      $region16: #{position_embedding_learned.3} parent=11 // pred_fallthru
        _
      // Predicated region
      $region17: #{position_embedding_learned.3} parent=11 // pred_check
        %p159 = pneg %p92
      $region18: #{position_embedding_learned.3} parent=11 // pred_check_branch
        %161 = sbr.rel (%p159) target = $region20
      $region19: #{position_embedding_learned.3} parent=11 // pred_region
        _
      $region20: #{position_embedding_learned.3} parent=11 // pred_fallthru
        _
      // Predicated region
      $region21: #{position_embedding_learned.3} parent=11 // pred_check
        %p162 = pneg %p113
      $region22: #{position_embedding_learned.3} parent=11 // pred_check_branch
        %164 = sbr.rel (%p162) target = $region24
      $region23: #{position_embedding_learned.3} parent=11 // pred_region
        _
      $region24: #{position_embedding_learned.3} parent=11 // pred_fallthru
        _
    $region12: #{position_embedding_learned.3} parent=5 // pred_fallthru
      _
    %p165 = scmp.lt.s32.totalorder %s10, 2
    // Predicated region
    $region25: #{position_embedding_learned.3} parent=5 // pred_check
      %p166 = pneg %p165
    $region26: #{position_embedding_learned.3} parent=5 // pred_check_branch
      %168 = sbr.rel (%p166) target = $region28
    $region27: #{position_embedding_learned.3} parent=5 // pred_region
      // Predicated region
      $region29: #{position_embedding_learned.3} parent=27 // pred_check
        %p169 = pneg %p44
      $region30: #{position_embedding_learned.3} parent=27 // pred_check_branch
        %171 = sbr.rel (%p169) target = $region32
      $region31: #{position_embedding_learned.3} parent=27 // pred_region
        %p172 = scmp.lt.s32.totalorder %s17, 1
        %s173 = scalar_select %p172, %s17, 1
        %p174 = scmp.lt.s32.totalorder %s18, 0
        %s175 = scalar_select %p174, %s18, 0
        %s176 = sadd.s32 %s175, %s173
        %s177 = smul.addr %s176, 4
        %s178 = scalar_lea.vmem %s0, %s177
      $region32: #{position_embedding_learned.3} parent=27 // pred_fallthru
        _
    $region28: #{position_embedding_learned.3} parent=5 // pred_fallthru
      _
    %p179 = scmp.le.s32.totalorder 1, %s10
    %p180 = scmp.lt.s32.totalorder %s10, 3
    %p181 = pnand %p179, %p180
    %p182 = pneg %p181
    // Predicated region
    $region33: #{position_embedding_learned.3} parent=5 // pred_check
      _
    $region34: #{position_embedding_learned.3} parent=5 // pred_check_branch
      %184 = sbr.rel (%p181) target = $region36
    $region35: #{position_embedding_learned.3} parent=5 // pred_region
      %s185 = ssub.s32 %s10, 1
      %p186 = scmp.lt.s32.totalorder %s19, 1
      %s187 = scalar_select %p186, %s19, 1
      %p188 = scmp.lt.s32.totalorder %s20, 0
      %s189 = scalar_select %p188, %s20, 0
      %s190 = sadd.s32 %s189, %s187
      %s191 = smul.addr %s190, 4
      %s192 = scalar_lea.vmem %s0, %s191
      %p193 = pneg %p50
      %p194 = pneg %p47
      %p195 = pneg %p71
      %p196 = pneg %p68
      %p197 = pneg %p92
      %p198 = pneg %p89
      %p199 = pneg %p113
      %p200 = pneg %p110
      %p201 = pneg %p141
      %p202 = pneg %p138
      %p203 = scmp.lt.s32.totalorder %s19, 1
      %s204 = scalar_select %p203, %s19, 1
      %p205 = scmp.lt.s32.totalorder %s20, 0
      %s206 = scalar_select %p205, %s20, 0
      %s207 = smul.addr %s204, 4
      %s208 = sadd.s32 %s206, %s207
      %s209 = smul.addr %s208, 8
      %s210 = scalar_lea.vmem %s4, %s209
      %p211 = scmp.lt.s32.totalorder %s19, 1
      %s212 = scalar_select %p211, %s19, 1
      %p213 = scmp.lt.s32.totalorder %s20, 0
      %s214 = scalar_select %p213, %s20, 0
      %s215 = sadd.s32 %s214, %s212
      %s216 = smul.addr %s215, 4
      %s217 = scalar_lea.vmem %s0, %s216
      %p218 = scmp.lt.s32.totalorder %s19, 1
      %s219 = scalar_select %p218, %s19, 1
      %p220 = scmp.lt.s32.totalorder %s20, 0
      %s221 = scalar_select %p220, %s20, 0
      %s222 = smul.addr %s219, 4
      %s223 = sadd.s32 %s221, %s222
      %s224 = smul.addr %s223, 8
      %s225 = scalar_lea.vmem %s4, %s224
      %v226 = vld [vmem:[%s217] sm:$0xf]
      %v227 = vld [vmem:[%s1] sm:$0xff]
      %v228 = vld [vmem:[%s1 + $0x8] sm:$0xff]
      %v229 = vld [vmem:[%s1 + $0x10] sm:$0xff]
      %v230 = vld [vmem:[%s1 + $0x18] sm:$0xff]
      %232 = vset.pattern.permute.xlu0 0
      %233 = vperm.xlu0 %232, %v227
      %v234 = vpop.permute.xlu0 %233
      %237 = vset.pattern.permute.xlu0 0
      %238 = vperm.xlu0 %237, %v228
      %v239 = vpop.permute.xlu0 %238
      %242 = vset.pattern.permute.xlu0 0
      %243 = vperm.xlu0 %242, %v229
      %v244 = vpop.permute.xlu0 %243
      %247 = vset.pattern.permute.xlu0 0
      %248 = vperm.xlu0 %247, %v230
      %v249 = vpop.permute.xlu0 %248
      %v251 = vperm.slane %v226, 0
      %v252 = vmul.f32 %v234, %v251
      %v253 = vmul.f32 %v239, %v251
      %v254 = vmul.f32 %v244, %v251
      %v255 = vmul.f32 %v249, %v251
      %256 = vset.pattern.permute.xlu0 1
      %257 = vperm.xlu0 %256, %v227
      %v258 = vpop.permute.xlu0 %257
      %260 = vset.pattern.permute.xlu0 1
      %261 = vperm.xlu0 %260, %v228
      %v262 = vpop.permute.xlu0 %261
      %264 = vset.pattern.permute.xlu0 1
      %265 = vperm.xlu0 %264, %v229
      %v266 = vpop.permute.xlu0 %265
      %268 = vset.pattern.permute.xlu0 1
      %269 = vperm.xlu0 %268, %v230
      %v270 = vpop.permute.xlu0 %269
      %v272 = vperm.slane %v226, 1
      %v273 = vmul.f32 %v258, %v272
      %v274 = vmul.f32 %v262, %v272
      %v275 = vmul.f32 %v266, %v272
      %v276 = vmul.f32 %v270, %v272
      %v277 = vadd.f32 %v252, %v273
      %v278 = vadd.f32 %v253, %v274
      %v279 = vadd.f32 %v254, %v275
      %v280 = vadd.f32 %v255, %v276
      %281 = vset.pattern.permute.xlu0 2
      %282 = vperm.xlu0 %281, %v227
      %v283 = vpop.permute.xlu0 %282
      %285 = vset.pattern.permute.xlu0 2
      %286 = vperm.xlu0 %285, %v228
      %v287 = vpop.permute.xlu0 %286
      %289 = vset.pattern.permute.xlu0 2
      %290 = vperm.xlu0 %289, %v229
      %v291 = vpop.permute.xlu0 %290
      %293 = vset.pattern.permute.xlu0 2
      %294 = vperm.xlu0 %293, %v230
      %v295 = vpop.permute.xlu0 %294
      %v297 = vperm.slane %v226, 2
      %v298 = vmul.f32 %v283, %v297
      %v299 = vmul.f32 %v287, %v297
      %v300 = vmul.f32 %v291, %v297
      %v301 = vmul.f32 %v295, %v297
      %v302 = vadd.f32 %v277, %v298
      %v303 = vadd.f32 %v278, %v299
      %v304 = vadd.f32 %v279, %v300
      %v305 = vadd.f32 %v280, %v301
      %306 = vset.pattern.permute.xlu0 3
      %307 = vperm.xlu0 %306, %v227
      %v308 = vpop.permute.xlu0 %307
      %310 = vset.pattern.permute.xlu0 3
      %311 = vperm.xlu0 %310, %v228
      %v312 = vpop.permute.xlu0 %311
      %314 = vset.pattern.permute.xlu0 3
      %315 = vperm.xlu0 %314, %v229
      %v316 = vpop.permute.xlu0 %315
      %318 = vset.pattern.permute.xlu0 3
      %319 = vperm.xlu0 %318, %v230
      %v320 = vpop.permute.xlu0 %319
      %v322 = vperm.slane %v226, 3
      %v323 = vmul.f32 %v308, %v322
      %v324 = vmul.f32 %v312, %v322
      %v325 = vmul.f32 %v316, %v322
      %v326 = vmul.f32 %v320, %v322
      %v327 = vadd.f32 %v302, %v323
      %v328 = vadd.f32 %v303, %v324
      %v329 = vadd.f32 %v304, %v325
      %v330 = vadd.f32 %v305, %v326
      %v331 = vld [vmem:[%s3] sm:$0xff]
      %v332 = vld [vmem:[%s3 + $0x8] sm:$0xff]
      %v333 = vld [vmem:[%s3 + $0x10] sm:$0xff]
      %v334 = vld [vmem:[%s3 + $0x18] sm:$0xff]
      %336 = vset.pattern.permute.xlu0 0
      %337 = vperm.xlu0 %336, %v331
      %v338 = vpop.permute.xlu0 %337
      %341 = vset.pattern.permute.xlu0 0
      %342 = vperm.xlu0 %341, %v332
      %v343 = vpop.permute.xlu0 %342
      %346 = vset.pattern.permute.xlu0 0
      %347 = vperm.xlu0 %346, %v333
      %v348 = vpop.permute.xlu0 %347
      %351 = vset.pattern.permute.xlu0 0
      %352 = vperm.xlu0 %351, %v334
      %v353 = vpop.permute.xlu0 %352
      %v355 = vmul.f32 %v327, %v338
      %v356 = vmul.f32 %v328, %v343
      %v357 = vmul.f32 %v329, %v348
      %v358 = vmul.f32 %v330, %v353
      %359 = vset.pattern.permute.xlu0 1
      %360 = vperm.xlu0 %359, %v331
      %v361 = vpop.permute.xlu0 %360
      %363 = vset.pattern.permute.xlu0 1
      %364 = vperm.xlu0 %363, %v332
      %v365 = vpop.permute.xlu0 %364
      %367 = vset.pattern.permute.xlu0 1
      %368 = vperm.xlu0 %367, %v333
      %v369 = vpop.permute.xlu0 %368
      %371 = vset.pattern.permute.xlu0 1
      %372 = vperm.xlu0 %371, %v334
      %v373 = vpop.permute.xlu0 %372
      %v375 = vadd.f32 %v355, %v361
      %v376 = vadd.f32 %v356, %v365
      %v377 = vadd.f32 %v357, %v369
      %v378 = vadd.f32 %v358, %v373
      %v379 = vmax.f32 %v375, 0.0
      %v380 = vmax.f32 %v376, 0.0
      %v381 = vmax.f32 %v377, 0.0
      %v382 = vmax.f32 %v378, 0.0
      %v383 = vld [vmem:[%s2] sm:$0xff]
      %v384 = vld [vmem:[%s2 + $0x8] sm:$0xff]
      %v385 = vld [vmem:[%s2 + $0x10] sm:$0xff]
      %v386 = vld [vmem:[%s2 + $0x18] sm:$0xff]
      %387 = vset.pattern.permute.xlu0 2
      %388 = vperm.xlu0 %387, %v331
      %v389 = vpop.permute.xlu0 %388
      %391 = vset.pattern.permute.xlu0 2
      %392 = vperm.xlu0 %391, %v332
      %v393 = vpop.permute.xlu0 %392
      %395 = vset.pattern.permute.xlu0 2
      %396 = vperm.xlu0 %395, %v333
      %v397 = vpop.permute.xlu0 %396
      %399 = vset.pattern.permute.xlu0 2
      %400 = vperm.xlu0 %399, %v334
      %v401 = vpop.permute.xlu0 %400
      %vm403 = vcmask 261120
      %v405 = vsel %vm403, %v383, 0
      %v408 = vsel %vm403, %v384, 0
      %v411 = vsel %vm403, %v385, 0
      %v414 = vsel %vm403, %v386, 0
      %416 = vmatpush.msra.mxu0 0.0
      %417 = vmatpush.msra.mxu0 0.0
      %418 = vmatpush.msra.mxu0 0.0
      %419 = vmatpush.msra.mxu0 0.0
      %420 = vmatpush.msra.mxu0 0.0
      %421 = vmatpush.msra.mxu0 0.0
      %422 = vmatpush.msra.mxu0 0.0
      %423 = vmatpush.msra.mxu0 0.0
      %424 = vmatpush.msra.mxu0 0.0
      %425 = vmatpush.msra.mxu0 0.0
      %426 = vmatpush.msra.mxu0 0.0
      %427 = vmatpush.msra.mxu0 0.0
      %428 = vmatpush.msra.mxu0 %v382
      %429 = vmatpush.msra.mxu0 %v381
      %430 = vmatpush.msra.mxu0 %v380
      %431 = vmatpush.msra.mxu0 %v379
      %432 = vmatmul.f32.gmra.mxu0 %v405
      %v433 = vpop.f32.mrf.mxu0
      %v434 = vadd.f32 %v389, %v433
      %435 = vmatmul.f32.gmra.mxu0 %v408
      %v436 = vpop.f32.mrf.mxu0
      %v437 = vadd.f32 %v393, %v436
      %438 = vmatmul.f32.gmra.mxu0 %v411
      %v439 = vpop.f32.mrf.mxu0
      %v440 = vadd.f32 %v397, %v439
      %441 = vmatmul.f32.gmra.mxu0 %v414
      %v442 = vpop.f32.mrf.mxu0
      %v443 = vadd.f32 %v401, %v442
      %444 = vdwg.mxu0
      %vm445 = vcmask 130048
      %446 = vst.msk [vmem:[%s225] sm:$0xff] %vm445, %v434
      %447 = vst.msk [vmem:[%s225 + $0x8] sm:$0xff] %vm445, %v437
      %448 = vst.msk [vmem:[%s225 + $0x10] sm:$0xff] %vm445, %v440
      %449 = vst.msk [vmem:[%s225 + $0x18] sm:$0xff] %vm445, %v443
      %p450 = scmp.lt.s32.totalorder %s19, 1
      %s451 = scalar_select %p450, %s19, 1
      %p452 = scmp.lt.s32.totalorder %s20, 0
      %s453 = scalar_select %p452, %s20, 0
      %s454 = smul.addr %s451, 4
      %s455 = sadd.s32 %s453, %s454
      %s456 = smul.addr %s455, 8
      %s457 = scalar_lea.vmem %s4, %s456
      // Predicated region
      $region37: #{position_embedding_learned.3} parent=35 // pred_check
        %p458 = pneg %p138
      $region38: #{position_embedding_learned.3} parent=35 // pred_check_branch
        %460 = sbr.rel (%p458) target = $region40
      $region39: #{position_embedding_learned.3} parent=35 // pred_region
        _
      $region40: #{position_embedding_learned.3} parent=35 // pred_fallthru
        _
    $region36: #{position_embedding_learned.3} parent=5 // pred_fallthru
      _
    %p461 = scmp.le.s32.totalorder 2, %s10
    // Predicated region
    $region41: #{position_embedding_learned.3} parent=5 // pred_check
      %p462 = pneg %p461
    $region42: #{position_embedding_learned.3} parent=5 // pred_check_branch
      %464 = sbr.rel (%p462) target = $region44
    $region43: #{position_embedding_learned.3} parent=5 // pred_region
      %s465 = ssub.s32 %s10, 2
      // Predicated region
      $region45: #{position_embedding_learned.3} parent=43 // pred_check
        %p466 = pneg %p144
      $region46: #{position_embedding_learned.3} parent=43 // pred_check_branch
        %468 = sbr.rel (%p466) target = $region48
      $region47: #{position_embedding_learned.3} parent=43 // pred_region
        %p469 = scmp.lt.s32.totalorder %s21, 1
        %s470 = scalar_select %p469, %s21, 1
        %p471 = scmp.lt.s32.totalorder %s22, 0
        %s472 = scalar_select %p471, %s22, 0
        %s473 = smul.addr %s470, 4
        %s474 = sadd.s32 %s472, %s473
        %s475 = smul.addr %s474, 8
        %s476 = scalar_lea.vmem %s4, %s475
      $region48: #{position_embedding_learned.3} parent=43 // pred_fallthru
        _
    $region44: #{position_embedding_learned.3} parent=5 // pred_fallthru
      _
  $region6: #{position_embedding_learned.3} parent=0 // loop_footer
    %s14 = sadd.s32 1, %s10
  $region7: #{position_embedding_learned.3} parent=0 // loop_footer_branch
    %9 = sbr.rel target = $region3
  $region8: #{position_embedding_learned.3} parent=0 // loop_exit
    _

</llo_original>
